<compile_context>
chip_gen: v5e
topology: v5e:2x2
jax: 0.10.0
libtpu: 0.0.40
codegen_flags: <defaults>
</compile_context>

<pallas_src>
import numpy as np
import jax
import jax.numpy as jnp
from jax.experimental import pallas as pl
from jax.experimental.pallas import tpu as pltpu

# ---------------- config (mirrors MeshDeformNetwork.__init__) ----------------
D = 4                    # config.mesh_deform_D
W = 32                   # config.mesh_deform_W
SKIPS = (D // 2,)        # = (2,)
INPUT_CH_VERT = 24       # vertices_pos_emb_dim
COMBINED_POSE_DIM = 16   # combined_pose_dim
IN_TOTAL = INPUT_CH_VERT + COMBINED_POSE_DIM   # 40: [vert_emb | pose]
MAX_D_SCALE = 0.0        # config default (no tanh clamp)
PRED_OPACITY = False     # config default -> d_opacity is None
PRED_COLOR = False       # config default -> d_color is None

N_VERTS = 256
HEAD_DIM = 3 + 3 + 4     # fused [warp(3) | scaling(3) | rotation(4)]
LANES = 128              # padded head / activation width

# --------- packed weight buffer layout (row offsets, all multiples of 8) -----
OFF_W0 = 0               # (40,128): rows 0:24 = W0,             cols 0:32
OFF_W1P = 40             # (40,128): rows 24:40 = W1[32:48],     cols 0:32  (pose part)
OFF_W2X = 80             # (40,128): rows 0:24 = W2[0:24],       cols 0:32  (skip part)
OFF_W1H = 120            # (128,128): rows 0:32 = W1[0:32],      cols 0:32
OFF_W2H = 248            # (128,128): rows 0:32 = W2[24:56],     cols 0:32
OFF_W3 = 376             # (128,128): rows 0:32 = W3,            cols 0:32
OFF_WH = 504             # (128,128): rows 0:32 = fused head,    cols 0:10
OFF_B = 632              # (8,128): rows 0..3 = b0..b3 (cols 0:32), row 4 = b_head
TOTAL_ROWS = 640


# --------------------------- parameter initialization ------------------------
def init_params(key):
    """Deterministic init mirroring the PyTorch module.

    Returns list of (w_T, b) pairs with w_T stored (in_dim, out_dim):
    D hidden layers + 1 fused head (W, 10).
    """
    in_dims = [INPUT_CH_VERT]
    for i in range(D - 1):
        din = W
        if i == 0:
            din += COMBINED_POSE_DIM
        if i + 1 in SKIPS:
            din += INPUT_CH_VERT
        in_dims.append(din)

    keys = jax.random.split(key, D + 3)
    params = []
    for i, din in enumerate(in_dims):
        # kaiming_uniform_(a=sqrt(5), fan_in, relu) -> U(-1/sqrt(fan_in), 1/sqrt(fan_in))
        bound = 1.0 / np.sqrt(din)
        w_t = jax.random.uniform(keys[i], (din, W), jnp.float32, -bound, bound)
        b = jnp.zeros((1, W), jnp.float32)
        params.append((w_t, b))

    # heads: normal(std=1e-5 / 1e-8 / 1e-5), zero bias, fused along output axis
    w_warp = 1e-5 * jax.random.normal(keys[D], (W, 3), jnp.float32)
    w_scal = 1e-8 * jax.random.normal(keys[D + 1], (W, 3), jnp.float32)
    w_rot = 1e-5 * jax.random.normal(keys[D + 2], (W, 4), jnp.float32)
    w_head = jnp.concatenate([w_warp, w_scal, w_rot], axis=1)      # (W, 10)
    b_head = jnp.zeros((1, HEAD_DIM), jnp.float32)
    params.append((w_head, b_head))
    return params


def pack_params(params):
    """Pack all weights/biases into one lane-dense (640, 128) f32 buffer."""
    (w0, b0), (w1, b1), (w2, b2), (w3, b3), (wh, bh) = params
    buf = jnp.zeros((TOTAL_ROWS, LANES), jnp.float32)
    # layer 0: consumes combined input [x|pose]; pose rows stay zero
    buf = buf.at[OFF_W0:OFF_W0 + INPUT_CH_VERT, 0:W].set(w0)
    # layer 1 split: h-part (rows 0:32 of w1) and pose-part (rows 32:48 of w1)
    buf = buf.at[OFF_W1H:OFF_W1H + W, 0:W].set(w1[0:W])
    buf = buf.at[OFF_W1P + INPUT_CH_VERT:
                 OFF_W1P + INPUT_CH_VERT + COMBINED_POSE_DIM, 0:W].set(
                     w1[W:W + COMBINED_POSE_DIM])
    # layer 2 split: x-part (rows 0:24 of w2) and h-part (rows 24:56 of w2)
    buf = buf.at[OFF_W2X:OFF_W2X + INPUT_CH_VERT, 0:W].set(w2[0:INPUT_CH_VERT])
    buf = buf.at[OFF_W2H:OFF_W2H + W, 0:W].set(
        w2[INPUT_CH_VERT:INPUT_CH_VERT + W])
    # layer 3
    buf = buf.at[OFF_W3:OFF_W3 + W, 0:W].set(w3)
    # fused head, zero-padded to 128 output lanes
    buf = buf.at[OFF_WH:OFF_WH + W, 0:HEAD_DIM].set(wh)
    # biases (one row each, lane-padded with zeros)
    buf = buf.at[OFF_B + 0, 0:W].set(b0[0])
    buf = buf.at[OFF_B + 1, 0:W].set(b1[0])
    buf = buf.at[OFF_B + 2, 0:W].set(b2[0])
    buf = buf.at[OFF_B + 3, 0:W].set(b3[0])
    buf = buf.at[OFF_B + 4, 0:HEAD_DIM].set(bh[0])
    return buf


# --------------------------------- kernel ------------------------------------
def mesh_deform_kernel(inp_ref, w_ref, out_ref):
    f32 = jnp.float32
    inp = inp_ref[...]                                    # (TM, 40) = [x | pose]

    # Static, 8-aligned, lane-dense views into the packed weight buffer.
    w0 = w_ref[OFF_W0:OFF_W0 + IN_TOTAL, :]               # (40, 128)
    w1p = w_ref[OFF_W1P:OFF_W1P + IN_TOTAL, :]            # (40, 128)
    w2x = w_ref[OFF_W2X:OFF_W2X + IN_TOTAL, :]            # (40, 128)
    w1h = w_ref[OFF_W1H:OFF_W1H + LANES, :]               # (128, 128)
    w2h = w_ref[OFF_W2H:OFF_W2H + LANES, :]               # (128, 128)
    w3 = w_ref[OFF_W3:OFF_W3 + LANES, :]                  # (128, 128)
    wh = w_ref[OFF_WH:OFF_WH + LANES, :]                  # (128, 128)
    bb = w_ref[OFF_B:OFF_B + 8, :]                        # (8, 128) bias tile
    b0 = bb[0:1, :]
    b1 = bb[1:2, :]
    b2 = bb[2:3, :]
    b3 = bb[3:4, :]
    bh = bb[4:5, :]

    # layer 0:  relu(x @ W0 + b0)           (pose rows of w0 are zero)
    h = jnp.maximum(jnp.dot(inp, w0, preferred_element_type=f32) + b0, 0.0)
    # layer 1:  relu(cat([h, pose]) @ W1)  ==  h@W1[:32] + pose@W1[32:48]
    h = jnp.maximum(
        jnp.dot(h, w1h, preferred_element_type=f32)
        + jnp.dot(inp, w1p, preferred_element_type=f32) + b1, 0.0)
    # layer 2:  relu(cat([x, h]) @ W2)     ==  x@W2[:24] + h@W2[24:56]
    h = jnp.maximum(
        jnp.dot(inp, w2x, preferred_element_type=f32)
        + jnp.dot(h, w2h, preferred_element_type=f32) + b2, 0.0)
    # layer 3
    h = jnp.maximum(jnp.dot(h, w3, preferred_element_type=f32) + b3, 0.0)
    # fused head (warp|scaling|rotation), padded to 128 lanes -> unmasked store
    out_ref[...] = jnp.dot(h, wh, preferred_element_type=f32) + bh


# -------------------------------- wrapper ------------------------------------
def _default_num_row_tiles(n):
    """One tile on single-TC chips (v5e/v6e); two parallel tiles on v7x."""
    try:
        kind = jax.devices()[0].device_kind.lower()
    except Exception:
        kind = ""
    tiles = 2 if ("v7" in kind or "7x" in kind) else 1
    if n % tiles != 0 or (n // tiles) % 8 != 0:
        tiles = 1
    return tiles


def mesh_deform_forward(vertices_pos_emb, pose_embeddings_expanded, params,
                        num_row_tiles=None):
    n = vertices_pos_emb.shape[0]
    # Merge the two inputs -> one lane-padded DMA per tile.
    inp = jnp.concatenate(
        [vertices_pos_emb, pose_embeddings_expanded], axis=-1).astype(jnp.float32)
    packed = pack_params(params)                          # (640, 128)

    if num_row_tiles is None:
        num_row_tiles = _default_num_row_tiles(n)
    tm = n // num_row_tiles

    out = pl.pallas_call(
        mesh_deform_kernel,
        out_shape=jax.ShapeDtypeStruct((n, LANES), jnp.float32),
        grid_spec=pltpu.PrefetchScalarGridSpec(
            num_scalar_prefetch=0,
            grid=(num_row_tiles,),
            in_specs=[
                pl.BlockSpec((tm, IN_TOTAL), lambda i: (i, 0)),
                # constant block index: packed weights stay VMEM-resident
                pl.BlockSpec((TOTAL_ROWS, LANES), lambda i: (0, 0)),
            ],
            out_specs=pl.BlockSpec((tm, LANES), lambda i: (i, 0)),
        ),
        compiler_params=pltpu.CompilerParams(
            dimension_semantics=("parallel",)),
    )(inp, packed)

    d_xyz = out[:, 0:3]
    scaling = out[:, 3:6]
    rotation = out[:, 6:10]
    if MAX_D_SCALE > 0:  # matches torch.tanh(scaling) * log(max_d_scale + 1e-9)
        scaling = jnp.tanh(scaling) * np.float32(np.log(MAX_D_SCALE + 1e-9))
    # TODO(synk): pred_opacity / pred_color heads would be extra fused head
    # columns / a second tiny MLP in the same kernel; disabled by the config
    # defaults used here, so the dict returns None like the module.
    return {
        "d_xyz": d_xyz,
        "d_rotation": rotation,
        "d_scaling": scaling,
        "d_opacity": None,
        "d_color": None,
    }


# ------------------------- plain-JAX reference (check) -----------------------
def reference_forward(vert, pose, params):
    x = vert
    h = x
    for i in range(D):
        w, b = params[i]
        h = jnp.maximum(h @ w + b, 0.0)
        if i == 0:
            h = jnp.concatenate([h, pose], axis=-1)
        if i + 1 in SKIPS:
            h = jnp.concatenate([x, h], axis=-1)
    w_head, b_head = params[D]
    out = h @ w_head + b_head
    d_xyz, scaling, rotation = out[:, 0:3], out[:, 3:6], out[:, 6:10]
    if MAX_D_SCALE > 0:
        scaling = jnp.tanh(scaling) * np.float32(np.log(MAX_D_SCALE + 1e-9))
    return d_xyz, scaling, rotation


# ---------------------------------- main --------------------------------------
if __name__ == "__main__":
    key = jax.random.PRNGKey(0)
    k_vert, k_pose, k_param = jax.random.split(key, 3)

    vertices_pos_emb = jax.random.normal(
        k_vert, (N_VERTS, INPUT_CH_VERT), jnp.float32)
    pose_embeddings_expanded = jax.random.normal(
        k_pose, (N_VERTS, COMBINED_POSE_DIM), jnp.float32)
    params = init_params(k_param)

    out = mesh_deform_forward(vertices_pos_emb, pose_embeddings_expanded, params)
    jax.block_until_ready(out["d_xyz"])
    jax.block_until_ready(out["d_rotation"])
    jax.block_until_ready(out["d_scaling"])

    ref_xyz, ref_scal, ref_rot = reference_forward(
        vertices_pos_emb, pose_embeddings_expanded, params)
    np.testing.assert_allclose(out["d_xyz"], ref_xyz, rtol=1e-5, atol=1e-6)
    np.testing.assert_allclose(out["d_scaling"], ref_scal, rtol=1e-5, atol=1e-6)
    np.testing.assert_allclose(out["d_rotation"], ref_rot, rtol=1e-5, atol=1e-6)

    assert out["d_opacity"] is None and out["d_color"] is None
    print("KERNEL_OK")
</pallas_src>

<mosaic_0001>
module attributes {stable_mosaic.version = 11 : i64} {
  func.func @mesh_deform_kernel(%arg0: i32, %arg1: memref<256x40xf32, #tpu.memory_space<vmem>>, %arg2: memref<640x128xf32, #tpu.memory_space<vmem>>, %arg3: memref<256x128xf32, #tpu.memory_space<vmem>>) attributes {dimension_semantics = [#tpu.dimension_semantics<parallel>], iteration_bounds = array<i64: 1>, scalar_prefetch = 0 : i64, scratch_operands = 0 : i64, tpu.core_type = #tpu.core_type<tc>, window_params = [{transform_indices = @transform_0, window_bounds = array<i64: 256, 40>}, {pipeline_mode = #tpu.pipeline_mode<synchronous>, transform_indices = @transform_1, window_bounds = array<i64: 640, 128>}, {transform_indices = @transform_2, window_bounds = array<i64: 256, 128>}]} {
    %c0 = arith.constant 0 : index
    %c0_0 = arith.constant 0 : index
    %0 = vector.load %arg1[%c0, %c0_0] : memref<256x40xf32, #tpu.memory_space<vmem>>, vector<256x40xf32>
    %c0_1 = arith.constant 0 : index
    %c0_2 = arith.constant 0 : index
    %1 = vector.load %arg2[%c0_1, %c0_2] : memref<640x128xf32, #tpu.memory_space<vmem>>, vector<40x128xf32>
    %c40 = arith.constant 40 : index
    %c0_3 = arith.constant 0 : index
    %2 = vector.load %arg2[%c40, %c0_3] : memref<640x128xf32, #tpu.memory_space<vmem>>, vector<40x128xf32>
    %c80 = arith.constant 80 : index
    %c0_4 = arith.constant 0 : index
    %3 = vector.load %arg2[%c80, %c0_4] : memref<640x128xf32, #tpu.memory_space<vmem>>, vector<40x128xf32>
    %c120 = arith.constant 120 : index
    %c0_5 = arith.constant 0 : index
    %4 = vector.load %arg2[%c120, %c0_5] : memref<640x128xf32, #tpu.memory_space<vmem>>, vector<128x128xf32>
    %c248 = arith.constant 248 : index
    %c0_6 = arith.constant 0 : index
    %5 = vector.load %arg2[%c248, %c0_6] : memref<640x128xf32, #tpu.memory_space<vmem>>, vector<128x128xf32>
    %c376 = arith.constant 376 : index
    %c0_7 = arith.constant 0 : index
    %6 = vector.load %arg2[%c376, %c0_7] : memref<640x128xf32, #tpu.memory_space<vmem>>, vector<128x128xf32>
    %c504 = arith.constant 504 : index
    %c0_8 = arith.constant 0 : index
    %7 = vector.load %arg2[%c504, %c0_8] : memref<640x128xf32, #tpu.memory_space<vmem>>, vector<128x128xf32>
    %c632 = arith.constant 632 : index
    %c0_9 = arith.constant 0 : index
    %8 = vector.load %arg2[%c632, %c0_9] : memref<640x128xf32, #tpu.memory_space<vmem>>, vector<8x128xf32>
    %9 = vector.extract_strided_slice %8 {offsets = [0, 0], sizes = [1, 128], strides = [1, 1]} : vector<8x128xf32> to vector<1x128xf32>
    %10 = vector.extract_strided_slice %8 {offsets = [1, 0], sizes = [1, 128], strides = [1, 1]} : vector<8x128xf32> to vector<1x128xf32>
    %11 = vector.extract_strided_slice %8 {offsets = [2, 0], sizes = [1, 128], strides = [1, 1]} : vector<8x128xf32> to vector<1x128xf32>
    %12 = vector.extract_strided_slice %8 {offsets = [3, 0], sizes = [1, 128], strides = [1, 1]} : vector<8x128xf32> to vector<1x128xf32>
    %13 = vector.extract_strided_slice %8 {offsets = [4, 0], sizes = [1, 128], strides = [1, 1]} : vector<8x128xf32> to vector<1x128xf32>
    %cst = arith.constant dense<0.000000e+00> : vector<256x128xf32>
    %14 = tpu.matmul %0, %1, %cst {dimension_numbers = #tpu.dot_dimension_numbers<[1], [0], [0], [1], [0, 0, 1, 1], [], []>} : vector<256x40xf32>, vector<40x128xf32>, vector<256x128xf32> -> vector<256x128xf32>
    %15 = vector.broadcast %9 : vector<1x128xf32> to vector<256x128xf32>
    %16 = arith.addf %14, %15 : vector<256x128xf32>
    %cst_10 = arith.constant 0.000000e+00 : f32
    %17 = vector.broadcast %cst_10 : f32 to vector<256x128xf32>
    %18 = arith.maximumf %16, %17 : vector<256x128xf32>
    %cst_11 = arith.constant dense<0.000000e+00> : vector<256x128xf32>
    %19 = tpu.matmul %18, %4, %cst_11 {dimension_numbers = #tpu.dot_dimension_numbers<[1], [0], [0], [1], [0, 0, 1, 1], [], []>} : vector<256x128xf32>, vector<128x128xf32>, vector<256x128xf32> -> vector<256x128xf32>
    %cst_12 = arith.constant dense<0.000000e+00> : vector<256x128xf32>
    %20 = tpu.matmul %0, %2, %cst_12 {dimension_numbers = #tpu.dot_dimension_numbers<[1], [0], [0], [1], [0, 0, 1, 1], [], []>} : vector<256x40xf32>, vector<40x128xf32>, vector<256x128xf32> -> vector<256x128xf32>
    %21 = arith.addf %19, %20 : vector<256x128xf32>
    %22 = vector.broadcast %10 : vector<1x128xf32> to vector<256x128xf32>
    %23 = arith.addf %21, %22 : vector<256x128xf32>
    %cst_13 = arith.constant 0.000000e+00 : f32
    %24 = vector.broadcast %cst_13 : f32 to vector<256x128xf32>
    %25 = arith.maximumf %23, %24 : vector<256x128xf32>
    %cst_14 = arith.constant dense<0.000000e+00> : vector<256x128xf32>
    %26 = tpu.matmul %0, %3, %cst_14 {dimension_numbers = #tpu.dot_dimension_numbers<[1], [0], [0], [1], [0, 0, 1, 1], [], []>} : vector<256x40xf32>, vector<40x128xf32>, vector<256x128xf32> -> vector<256x128xf32>
    %cst_15 = arith.constant dense<0.000000e+00> : vector<256x128xf32>
    %27 = tpu.matmul %25, %5, %cst_15 {dimension_numbers = #tpu.dot_dimension_numbers<[1], [0], [0], [1], [0, 0, 1, 1], [], []>} : vector<256x128xf32>, vector<128x128xf32>, vector<256x128xf32> -> vector<256x128xf32>
    %28 = arith.addf %26, %27 : vector<256x128xf32>
    %29 = vector.broadcast %11 : vector<1x128xf32> to vector<256x128xf32>
    %30 = arith.addf %28, %29 : vector<256x128xf32>
    %cst_16 = arith.constant 0.000000e+00 : f32
    %31 = vector.broadcast %cst_16 : f32 to vector<256x128xf32>
    %32 = arith.maximumf %30, %31 : vector<256x128xf32>
    %cst_17 = arith.constant dense<0.000000e+00> : vector<256x128xf32>
    %33 = tpu.matmul %32, %6, %cst_17 {dimension_numbers = #tpu.dot_dimension_numbers<[1], [0], [0], [1], [0, 0, 1, 1], [], []>} : vector<256x128xf32>, vector<128x128xf32>, vector<256x128xf32> -> vector<256x128xf32>
    %34 = vector.broadcast %12 : vector<1x128xf32> to vector<256x128xf32>
    %35 = arith.addf %33, %34 : vector<256x128xf32>
    %cst_18 = arith.constant 0.000000e+00 : f32
    %36 = vector.broadcast %cst_18 : f32 to vector<256x128xf32>
    %37 = arith.maximumf %35, %36 : vector<256x128xf32>
    %cst_19 = arith.constant dense<0.000000e+00> : vector<256x128xf32>
    %38 = tpu.matmul %37, %7, %cst_19 {dimension_numbers = #tpu.dot_dimension_numbers<[1], [0], [0], [1], [0, 0, 1, 1], [], []>} : vector<256x128xf32>, vector<128x128xf32>, vector<256x128xf32> -> vector<256x128xf32>
    %39 = vector.broadcast %13 : vector<1x128xf32> to vector<256x128xf32>
    %40 = arith.addf %38, %39 : vector<256x128xf32>
    %c0_20 = arith.constant 0 : index
    %c0_21 = arith.constant 0 : index
    %41 = vector.load %arg3[%c0_20, %c0_21] : memref<256x128xf32, #tpu.memory_space<vmem>>, vector<256x128xf32>
    tpu.vector_store %arg3[%c0_20, %c0_21], %40 {strides = array<i32>} : memref<256x128xf32, #tpu.memory_space<vmem>>, vector<256x128xf32>,
    return
  }
  func.func @transform_0(%arg0: i32) -> (i32, i32) {
    %c0_i32 = arith.constant 0 : i32
    %c0_i32_0 = arith.constant 0 : i32
    return %arg0, %c0_i32 : i32, i32
  }
  func.func @transform_1(%arg0: i32) -> (i32, i32) {
    %c0_i32 = arith.constant 0 : i32
    %c0_i32_0 = arith.constant 0 : i32
    %c0_i32_1 = arith.constant 0 : i32
    return %c0_i32, %c0_i32_0 : i32, i32
  }
  func.func @transform_2(%arg0: i32) -> (i32, i32) {
    %c0_i32 = arith.constant 0 : i32
    %c0_i32_0 = arith.constant 0 : i32
    return %arg0, %c0_i32 : i32, i32
  }
}

</mosaic_0001>

<llo_original>
// kernel: tpu_custom_call.1
$region0: #{tpu_custom_call.1}
  #allocation0 [shape = 'u32[]', space=smem, size = 0x4, offset = 0x4, fixed_abs, tag = 'smem constant byte address 0x4 - core index']
  #allocation1 [shape = 'u32[72,128]{1,0:T(1,128)}', space=vmem, size = 0x9000, scoped, tag = 'internal scratch']
  %s0 = inlined_call_operand.vmem [shape: f32[256,40], index: 0, kind: input, shape index: {}]
  %s1 = inlined_call_operand.hbm [shape: f32[640,128], index: 1, kind: input, shape index: {}]
  %s2 = inlined_call_operand.hbm [shape: f32[256,128], index: 2, kind: output, shape index: {}]
  %s3 = sld [smem:[#allocation0]]
  $region22: #{tpu_custom_call.1} parent=0
    _
  %s5 = ssub.s32 1, %s3
  %s6 = scalar_select 0, %s5, %s3
  $region1: #{tpu_custom_call.1} parent=0
    #allocation2 [shape = 'u8[327680]{0}', space=vmem, size = 0x50000, scoped, tag = 'input window, operand 1, single buffered']
    #allocation3 [shape = 's32[1]{0}', space=sflag, size = 0x4, scoped, tag = 'scoped memory for tpu_custom_call.1']
    #allocation4 [shape = 's32[1]{0}', space=sflag, size = 0x4, scoped, tag = 'scoped memory for tpu_custom_call.1']
    #allocation5 [shape = 'u8[131072]{0}', space=vmem, size = 0x20000, scoped, tag = 'output window, operand 0, single buffered']
    %7 = vsyncpa [#allocation3], 0
    %8 = vsyncpa [#allocation4], 0
    // Predicated region
    $region2: #{tpu_custom_call.1} parent=1 // pred_check
      _
    $region3: #{tpu_custom_call.1} parent=1 // pred_check_branch
      %10 = sbr.rel (0) target = $region5
    $region4: #{tpu_custom_call.1} parent=1 // pred_region
      _
    $region5: #{tpu_custom_call.1} parent=1 // pred_fallthru
      _
    // Predicated region
    $region6: #{tpu_custom_call.1} parent=1 // pred_check
      _
    $region7: #{tpu_custom_call.1} parent=1 // pred_check_branch
      %12 = sbr.rel (0) target = $region9
    $region8: #{tpu_custom_call.1} parent=1 // pred_region
      %14 = vsyncadd [#allocation3], 0
      %s15 = sshll.u32 %s1, 4
      %s16 = int_to_ptr.hbm [resolvable:$true] %s15
      %s17 = sshll.u32 [#allocation2], 4
      %s18 = int_to_ptr.vmem [resolvable:$true] %s17
      %23 = dma.hbm_to_vmem [thread:$0]  %s16, 10240, %s18, [#allocation3], 128, 128, 8
    $region9: #{tpu_custom_call.1} parent=1 // pred_fallthru
      _
    // Predicated region
    $region10: #{tpu_custom_call.1} parent=1 // pred_check
      _
    $region11: #{tpu_custom_call.1} parent=1 // pred_check_branch
      %25 = sbr.rel (0) target = $region13
    $region12: #{tpu_custom_call.1} parent=1 // pred_region
      %27 = dma.done [#allocation3], 10240
    $region13: #{tpu_custom_call.1} parent=1 // pred_fallthru
      _
    %v28 = vld [vmem:[%s0] sm:$0xff]
    %v29 = vld [vmem:[%s0 + $0x8] sm:$0xff]
    %v30 = vld [vmem:[%s0 + $0x10] sm:$0xff]
    %v31 = vld [vmem:[%s0 + $0x18] sm:$0xff]
    %v32 = vld [vmem:[%s0 + $0x20] sm:$0xff]
    %v33 = vld [vmem:[%s0 + $0x28] sm:$0xff]
    %v34 = vld [vmem:[%s0 + $0x30] sm:$0xff]
    %v35 = vld [vmem:[%s0 + $0x38] sm:$0xff]
    %v36 = vld [vmem:[%s0 + $0x40] sm:$0xff]
    %v37 = vld [vmem:[%s0 + $0x48] sm:$0xff]
    %v38 = vld [vmem:[%s0 + $0x50] sm:$0xff]
    %v39 = vld [vmem:[%s0 + $0x58] sm:$0xff]
    %v40 = vld [vmem:[%s0 + $0x60] sm:$0xff]
    %v41 = vld [vmem:[%s0 + $0x68] sm:$0xff]
    %v42 = vld [vmem:[%s0 + $0x70] sm:$0xff]
    %v43 = vld [vmem:[%s0 + $0x78] sm:$0xff]
    %v44 = vld [vmem:[%s0 + $0x80] sm:$0xff]
    %v45 = vld [vmem:[%s0 + $0x88] sm:$0xff]
    %v46 = vld [vmem:[%s0 + $0x90] sm:$0xff]
    %v47 = vld [vmem:[%s0 + $0x98] sm:$0xff]
    %v48 = vld [vmem:[%s0 + $0xa0] sm:$0xff]
    %v49 = vld [vmem:[%s0 + $0xa8] sm:$0xff]
    %v50 = vld [vmem:[%s0 + $0xb0] sm:$0xff]
    %v51 = vld [vmem:[%s0 + $0xb8] sm:$0xff]
    %v52 = vld [vmem:[%s0 + $0xc0] sm:$0xff]
    %v53 = vld [vmem:[%s0 + $0xc8] sm:$0xff]
    %v54 = vld [vmem:[%s0 + $0xd0] sm:$0xff]
    %v55 = vld [vmem:[%s0 + $0xd8] sm:$0xff]
    %v56 = vld [vmem:[%s0 + $0xe0] sm:$0xff]
    %v57 = vld [vmem:[%s0 + $0xe8] sm:$0xff]
    %v58 = vld [vmem:[%s0 + $0xf0] sm:$0xff]
    %v59 = vld [vmem:[%s0 + $0xf8] sm:$0xff]
    %v60 = vld [vmem:[#allocation2] sm:$0xff]
    %v61 = vld [vmem:[#allocation2 + $0x8] sm:$0xff]
    %v62 = vld [vmem:[#allocation2 + $0x10] sm:$0xff]
    %v63 = vld [vmem:[#allocation2 + $0x18] sm:$0xff]
    %v64 = vld [vmem:[#allocation2 + $0x20] sm:$0xff]
    %v65 = vld [vmem:[#allocation2 + $0x28] sm:$0xff]
    %v66 = vld [vmem:[#allocation2 + $0x30] sm:$0xff]
    %v67 = vld [vmem:[#allocation2 + $0x38] sm:$0xff]
    %v68 = vld [vmem:[#allocation2 + $0x40] sm:$0xff]
    %v69 = vld [vmem:[#allocation2 + $0x48] sm:$0xff]
    %v70 = vld [vmem:[#allocation2 + $0x50] sm:$0xff]
    %v71 = vld [vmem:[#allocation2 + $0x58] sm:$0xff]
    %v72 = vld [vmem:[#allocation2 + $0x60] sm:$0xff]
    %v73 = vld [vmem:[#allocation2 + $0x68] sm:$0xff]
    %v74 = vld [vmem:[#allocation2 + $0x70] sm:$0xff]
    %v75 = vld [vmem:[#allocation2 + $0x78] sm:$0xff]
    %v76 = vld [vmem:[#allocation2 + $0x80] sm:$0xff]
    %v77 = vld [vmem:[#allocation2 + $0x88] sm:$0xff]
    %v78 = vld [vmem:[#allocation2 + $0x90] sm:$0xff]
    %v79 = vld [vmem:[#allocation2 + $0x98] sm:$0xff]
    %v80 = vld [vmem:[#allocation2 + $0xa0] sm:$0xff]
    %v81 = vld [vmem:[#allocation2 + $0xa8] sm:$0xff]
    %v82 = vld [vmem:[#allocation2 + $0xb0] sm:$0xff]
    %v83 = vld [vmem:[#allocation2 + $0xb8] sm:$0xff]
    %v84 = vld [vmem:[#allocation2 + $0xc0] sm:$0xff]
    %v85 = vld [vmem:[#allocation2 + $0xc8] sm:$0xff]
    %v86 = vld [vmem:[#allocation2 + $0xd0] sm:$0xff]
    %v87 = vld [vmem:[#allocation2 + $0xd8] sm:$0xff]
    %v88 = vld [vmem:[#allocation2 + $0xe0] sm:$0xff]
    %v89 = vld [vmem:[#allocation2 + $0xe8] sm:$0xff]
    %v90 = vld [vmem:[#allocation2 + $0xf0] sm:$0xff]
    %v91 = vld [vmem:[#allocation2 + $0xf8] sm:$0xff]
    %v92 = vld [vmem:[#allocation2 + $0x100] sm:$0xff]
    %v93 = vld [vmem:[#allocation2 + $0x108] sm:$0xff]
    %v94 = vld [vmem:[#allocation2 + $0x110] sm:$0xff]
    %v95 = vld [vmem:[#allocation2 + $0x118] sm:$0xff]
    %v96 = vld [vmem:[#allocation2 + $0x120] sm:$0xff]
    %v97 = vld [vmem:[#allocation2 + $0x128] sm:$0xff]
    %v98 = vld [vmem:[#allocation2 + $0x130] sm:$0xff]
    %v99 = vld [vmem:[#allocation2 + $0x138] sm:$0xff]
    %v100 = vld [vmem:[#allocation2 + $0x140] sm:$0xff]
    %v101 = vld [vmem:[#allocation2 + $0x148] sm:$0xff]
    %v102 = vld [vmem:[#allocation2 + $0x150] sm:$0xff]
    %v103 = vld [vmem:[#allocation2 + $0x158] sm:$0xff]
    %v104 = vld [vmem:[#allocation2 + $0x160] sm:$0xff]
    %v105 = vld [vmem:[#allocation2 + $0x168] sm:$0xff]
    %v106 = vld [vmem:[#allocation2 + $0x170] sm:$0xff]
    %v107 = vld [vmem:[#allocation2 + $0x178] sm:$0xff]
    %v108 = vld [vmem:[#allocation2 + $0x180] sm:$0xff]
    %v109 = vld [vmem:[#allocation2 + $0x188] sm:$0xff]
    %v110 = vld [vmem:[#allocation2 + $0x190] sm:$0xff]
    %v111 = vld [vmem:[#allocation2 + $0x198] sm:$0xff]
    %v112 = vld [vmem:[#allocation2 + $0x1a0] sm:$0xff]
    %v113 = vld [vmem:[#allocation2 + $0x1a8] sm:$0xff]
    %v114 = vld [vmem:[#allocation2 + $0x1b0] sm:$0xff]
    %v115 = vld [vmem:[#allocation2 + $0x1b8] sm:$0xff]
    %v116 = vld [vmem:[#allocation2 + $0x1c0] sm:$0xff]
    %v117 = vld [vmem:[#allocation2 + $0x1c8] sm:$0xff]
    %v118 = vld [vmem:[#allocation2 + $0x1d0] sm:$0xff]
    %v119 = vld [vmem:[#allocation2 + $0x1d8] sm:$0xff]
    %v120 = vld [vmem:[#allocation2 + $0x1e0] sm:$0xff]
    %v121 = vld [vmem:[#allocation2 + $0x1e8] sm:$0xff]
    %v122 = vld [vmem:[#allocation2 + $0x1f0] sm:$0xff]
    %v123 = vld [vmem:[#allocation2 + $0x1f8] sm:$0xff]
    %v124 = vld [vmem:[#allocation2 + $0x200] sm:$0xff]
    %v125 = vld [vmem:[#allocation2 + $0x208] sm:$0xff]
    %v126 = vld [vmem:[#allocation2 + $0x210] sm:$0xff]
    %v127 = vld [vmem:[#allocation2 + $0x218] sm:$0xff]
    %v128 = vld [vmem:[#allocation2 + $0x220] sm:$0xff]
    %v129 = vld [vmem:[#allocation2 + $0x228] sm:$0xff]
    %v130 = vld [vmem:[#allocation2 + $0x230] sm:$0xff]
    %v131 = vld [vmem:[#allocation2 + $0x238] sm:$0xff]
    %v132 = vld [vmem:[#allocation2 + $0x240] sm:$0xff]
    %v133 = vld [vmem:[#allocation2 + $0x248] sm:$0xff]
    %v134 = vld [vmem:[#allocation2 + $0x250] sm:$0xff]
    %v135 = vld [vmem:[#allocation2 + $0x258] sm:$0xff]
    %v136 = vld [vmem:[#allocation2 + $0x260] sm:$0xff]
    %v137 = vld [vmem:[#allocation2 + $0x268] sm:$0xff]
    %v138 = vld [vmem:[#allocation2 + $0x270] sm:$0xff]
    %v139 = vld [vmem:[#allocation2 + $0x278] sm:$0xff]
    %v140 = vperm.slane %v139, 0
    %vm141 = vcmask 326656
    %v143 = vsel %vm141, %v28, 0
    %v146 = vsel %vm141, %v29, 0
    %v149 = vsel %vm141, %v30, 0
    %v152 = vsel %vm141, %v31, 0
    %v155 = vsel %vm141, %v32, 0
    %v158 = vsel %vm141, %v33, 0
    %v161 = vsel %vm141, %v34, 0
    %v164 = vsel %vm141, %v35, 0
    %v167 = vsel %vm141, %v36, 0
    %v170 = vsel %vm141, %v37, 0
    %v173 = vsel %vm141, %v38, 0
    %v176 = vsel %vm141, %v39, 0
    %v179 = vsel %vm141, %v40, 0
    %v182 = vsel %vm141, %v41, 0
    %v185 = vsel %vm141, %v42, 0
    %v188 = vsel %vm141, %v43, 0
    %v191 = vsel %vm141, %v44, 0
    %v194 = vsel %vm141, %v45, 0
    %v197 = vsel %vm141, %v46, 0
    %v200 = vsel %vm141, %v47, 0
    %v203 = vsel %vm141, %v48, 0
    %v206 = vsel %vm141, %v49, 0
    %v209 = vsel %vm141, %v50, 0
    %v212 = vsel %vm141, %v51, 0
    %v215 = vsel %vm141, %v52, 0
    %v218 = vsel %vm141, %v53, 0
    %v221 = vsel %vm141, %v54, 0
    %v224 = vsel %vm141, %v55, 0
    %v227 = vsel %vm141, %v56, 0
    %v230 = vsel %vm141, %v57, 0
    %v233 = vsel %vm141, %v58, 0
    %v236 = vsel %vm141, %v59, 0
    %238 = vmatpush.msra.mxu0 0.0
    %239 = vmatpush.msra.mxu0 0.0
    %240 = vmatpush.msra.mxu0 0.0
    %241 = vmatpush.msra.mxu0 0.0
    %242 = vmatpush.msra.mxu0 0.0
    %243 = vmatpush.msra.mxu0 0.0
    %244 = vmatpush.msra.mxu0 0.0
    %245 = vmatpush.msra.mxu0 0.0
    %246 = vmatpush.msra.mxu0 0.0
    %247 = vmatpush.msra.mxu0 0.0
    %248 = vmatpush.msra.mxu0 0.0
    %249 = vmatpush.msra.mxu0 %v64
    %250 = vmatpush.msra.mxu0 %v63
    %251 = vmatpush.msra.mxu0 %v62
    %252 = vmatpush.msra.mxu0 %v61
    %253 = vmatpush.msra.mxu0 %v60
    %254 = vmatmul.f32.gmra.mxu0 %v143
    %v255 = vpop.f32.mrf.mxu0
    %v256 = vadd.f32 %v140, %v255
    %257 = vmatmul.f32.gmra.mxu0 %v146
    %v258 = vpop.f32.mrf.mxu0
    %v259 = vadd.f32 %v140, %v258
    %260 = vmatmul.f32.gmra.mxu0 %v149
    %v261 = vpop.f32.mrf.mxu0
    %v262 = vadd.f32 %v140, %v261
    %263 = vmatmul.f32.gmra.mxu0 %v152
    %v264 = vpop.f32.mrf.mxu0
    %v265 = vadd.f32 %v140, %v264
    %266 = vmatmul.f32.gmra.mxu0 %v155
    %v267 = vpop.f32.mrf.mxu0
    %v268 = vadd.f32 %v140, %v267
    %269 = vmatmul.f32.gmra.mxu0 %v158
    %v270 = vpop.f32.mrf.mxu0
    %v271 = vadd.f32 %v140, %v270
    %272 = vmatmul.f32.gmra.mxu0 %v161
    %v273 = vpop.f32.mrf.mxu0
    %v274 = vadd.f32 %v140, %v273
    %275 = vmatmul.f32.gmra.mxu0 %v164
    %v276 = vpop.f32.mrf.mxu0
    %v277 = vadd.f32 %v140, %v276
    %278 = vmatmul.f32.gmra.mxu0 %v167
    %v279 = vpop.f32.mrf.mxu0
    %v280 = vadd.f32 %v140, %v279
    %281 = vmatmul.f32.gmra.mxu0 %v170
    %v282 = vpop.f32.mrf.mxu0
    %v283 = vadd.f32 %v140, %v282
    %284 = vmatmul.f32.gmra.mxu0 %v173
    %v285 = vpop.f32.mrf.mxu0
    %v286 = vadd.f32 %v140, %v285
    %287 = vmatmul.f32.gmra.mxu0 %v176
    %v288 = vpop.f32.mrf.mxu0
    %v289 = vadd.f32 %v140, %v288
    %290 = vmatmul.f32.gmra.mxu0 %v179
    %v291 = vpop.f32.mrf.mxu0
    %v292 = vadd.f32 %v140, %v291
    %293 = vmatmul.f32.gmra.mxu0 %v182
    %v294 = vpop.f32.mrf.mxu0
    %v295 = vadd.f32 %v140, %v294
    %296 = vmatmul.f32.gmra.mxu0 %v185
    %v297 = vpop.f32.mrf.mxu0
    %v298 = vadd.f32 %v140, %v297
    %299 = vmatmul.f32.gmra.mxu0 %v188
    %v300 = vpop.f32.mrf.mxu0
    %v301 = vadd.f32 %v140, %v300
    %302 = vmatmul.f32.gmra.mxu0 %v191
    %v303 = vpop.f32.mrf.mxu0
    %v304 = vadd.f32 %v140, %v303
    %305 = vmatmul.f32.gmra.mxu0 %v194
    %v306 = vpop.f32.mrf.mxu0
    %v307 = vadd.f32 %v140, %v306
    %308 = vmatmul.f32.gmra.mxu0 %v197
    %v309 = vpop.f32.mrf.mxu0
    %v310 = vadd.f32 %v140, %v309
    %311 = vmatmul.f32.gmra.mxu0 %v200
    %v312 = vpop.f32.mrf.mxu0
    %v313 = vadd.f32 %v140, %v312
    %314 = vmatmul.f32.gmra.mxu0 %v203
    %v315 = vpop.f32.mrf.mxu0
    %v316 = vadd.f32 %v140, %v315
    %317 = vmatmul.f32.gmra.mxu0 %v206
    %v318 = vpop.f32.mrf.mxu0
    %v319 = vadd.f32 %v140, %v318
    %320 = vmatmul.f32.gmra.mxu0 %v209
    %v321 = vpop.f32.mrf.mxu0
    %v322 = vadd.f32 %v140, %v321
    %323 = vmatmul.f32.gmra.mxu0 %v212
    %v324 = vpop.f32.mrf.mxu0
    %v325 = vadd.f32 %v140, %v324
    %326 = vmatmul.f32.gmra.mxu0 %v215
    %v327 = vpop.f32.mrf.mxu0
    %v328 = vadd.f32 %v140, %v327
    %329 = vmatmul.f32.gmra.mxu0 %v218
    %v330 = vpop.f32.mrf.mxu0
    %v331 = vadd.f32 %v140, %v330
    %332 = vmatmul.f32.gmra.mxu0 %v221
    %v333 = vpop.f32.mrf.mxu0
    %v334 = vadd.f32 %v140, %v333
    %335 = vmatmul.f32.gmra.mxu0 %v224
    %v336 = vpop.f32.mrf.mxu0
    %v337 = vadd.f32 %v140, %v336
    %338 = vmatmul.f32.gmra.mxu0 %v227
    %v339 = vpop.f32.mrf.mxu0
    %v340 = vadd.f32 %v140, %v339
    %341 = vmatmul.f32.gmra.mxu0 %v230
    %v342 = vpop.f32.mrf.mxu0
    %v343 = vadd.f32 %v140, %v342
    %344 = vmatmul.f32.gmra.mxu0 %v233
    %v345 = vpop.f32.mrf.mxu0
    %v346 = vadd.f32 %v140, %v345
    %347 = vmatmul.f32.gmra.mxu0 %v236
    %v348 = vpop.f32.mrf.mxu0
    %v349 = vadd.f32 %v140, %v348
    %350 = vdwg.mxu0
    %v351 = vmax.f32 %v256, 0.0
    %v352 = vmax.f32 %v259, 0.0
    %v353 = vmax.f32 %v262, 0.0
    %v354 = vmax.f32 %v265, 0.0
    %v355 = vmax.f32 %v268, 0.0
    %v356 = vmax.f32 %v271, 0.0
    %v357 = vmax.f32 %v274, 0.0
    %v358 = vmax.f32 %v277, 0.0
    %v359 = vmax.f32 %v280, 0.0
    %v360 = vmax.f32 %v283, 0.0
    %v361 = vmax.f32 %v286, 0.0
    %v362 = vmax.f32 %v289, 0.0
    %v363 = vmax.f32 %v292, 0.0
    %v364 = vmax.f32 %v295, 0.0
    %v365 = vmax.f32 %v298, 0.0
    %v366 = vmax.f32 %v301, 0.0
    %v367 = vmax.f32 %v304, 0.0
    %v368 = vmax.f32 %v307, 0.0
    %v369 = vmax.f32 %v310, 0.0
    %v370 = vmax.f32 %v313, 0.0
    %v371 = vmax.f32 %v316, 0.0
    %v372 = vmax.f32 %v319, 0.0
    %v373 = vmax.f32 %v322, 0.0
    %v374 = vmax.f32 %v325, 0.0
    %v375 = vmax.f32 %v328, 0.0
    %v376 = vmax.f32 %v331, 0.0
    %v377 = vmax.f32 %v334, 0.0
    %v378 = vmax.f32 %v337, 0.0
    %v379 = vmax.f32 %v340, 0.0
    %v380 = vmax.f32 %v343, 0.0
    %v381 = vmax.f32 %v346, 0.0
    %v382 = vmax.f32 %v349, 0.0
    %383 = vmatpush.msra.mxu0 0.0
    %384 = vmatpush.msra.mxu0 0.0
    %385 = vmatpush.msra.mxu0 0.0
    %386 = vmatpush.msra.mxu0 0.0
    %387 = vmatpush.msra.mxu0 0.0
    %388 = vmatpush.msra.mxu0 0.0
    %389 = vmatpush.msra.mxu0 0.0
    %390 = vmatpush.msra.mxu0 0.0
    %391 = vmatpush.msra.mxu0 0.0
    %392 = vmatpush.msra.mxu0 0.0
    %393 = vmatpush.msra.mxu0 0.0
    %394 = vmatpush.msra.mxu0 %v69
    %395 = vmatpush.msra.mxu0 %v68
    %396 = vmatpush.msra.mxu0 %v67
    %397 = vmatpush.msra.mxu0 %v66
    %398 = vmatpush.msra.mxu0 %v65
    %399 = vmatmul.f32.gmra.mxu0 %v143
    %v400 = vpop.f32.mrf.mxu0
    %v401 = vadd.f32 0.0, %v400
    %402 = vmatmul.f32.gmra.mxu0 %v146
    %v403 = vpop.f32.mrf.mxu0
    %v404 = vadd.f32 0.0, %v403
    %405 = vmatmul.f32.gmra.mxu0 %v149
    %v406 = vpop.f32.mrf.mxu0
    %v407 = vadd.f32 0.0, %v406
    %408 = vmatmul.f32.gmra.mxu0 %v152
    %v409 = vpop.f32.mrf.mxu0
    %v410 = vadd.f32 0.0, %v409
    %411 = vmatmul.f32.gmra.mxu0 %v155
    %v412 = vpop.f32.mrf.mxu0
    %v413 = vadd.f32 0.0, %v412
    %414 = vmatmul.f32.gmra.mxu0 %v158
    %v415 = vpop.f32.mrf.mxu0
    %v416 = vadd.f32 0.0, %v415
    %417 = vmatmul.f32.gmra.mxu0 %v161
    %v418 = vpop.f32.mrf.mxu0
    %v419 = vadd.f32 0.0, %v418
    %420 = vmatmul.f32.gmra.mxu0 %v164
    %v421 = vpop.f32.mrf.mxu0
    %v422 = vadd.f32 0.0, %v421
    %423 = vmatmul.f32.gmra.mxu0 %v167
    %v424 = vpop.f32.mrf.mxu0
    %v425 = vadd.f32 0.0, %v424
    %426 = vmatmul.f32.gmra.mxu0 %v170
    %v427 = vpop.f32.mrf.mxu0
    %v428 = vadd.f32 0.0, %v427
    %429 = vmatmul.f32.gmra.mxu0 %v173
    %v430 = vpop.f32.mrf.mxu0
    %v431 = vadd.f32 0.0, %v430
    %432 = vmatmul.f32.gmra.mxu0 %v176
    %v433 = vpop.f32.mrf.mxu0
    %v434 = vadd.f32 0.0, %v433
    %435 = vmatmul.f32.gmra.mxu0 %v179
    %v436 = vpop.f32.mrf.mxu0
    %v437 = vadd.f32 0.0, %v436
    %438 = vmatmul.f32.gmra.mxu0 %v182
    %v439 = vpop.f32.mrf.mxu0
    %v440 = vadd.f32 0.0, %v439
    %441 = vmatmul.f32.gmra.mxu0 %v185
    %v442 = vpop.f32.mrf.mxu0
    %v443 = vadd.f32 0.0, %v442
    %444 = vmatmul.f32.gmra.mxu0 %v188
    %v445 = vpop.f32.mrf.mxu0
    %v446 = vadd.f32 0.0, %v445
    %447 = vmatmul.f32.gmra.mxu0 %v191
    %v448 = vpop.f32.mrf.mxu0
    %v449 = vadd.f32 0.0, %v448
    %450 = vmatmul.f32.gmra.mxu0 %v194
    %v451 = vpop.f32.mrf.mxu0
    %v452 = vadd.f32 0.0, %v451
    %453 = vmatmul.f32.gmra.mxu0 %v197
    %v454 = vpop.f32.mrf.mxu0
    %v455 = vadd.f32 0.0, %v454
    %456 = vmatmul.f32.gmra.mxu0 %v200
    %v457 = vpop.f32.mrf.mxu0
    %v458 = vadd.f32 0.0, %v457
    %459 = vmatmul.f32.gmra.mxu0 %v203
    %v460 = vpop.f32.mrf.mxu0
    %v461 = vadd.f32 0.0, %v460
    %462 = vmatmul.f32.gmra.mxu0 %v206
    %v463 = vpop.f32.mrf.mxu0
    %v464 = vadd.f32 0.0, %v463
    %465 = vmatmul.f32.gmra.mxu0 %v209
    %v466 = vpop.f32.mrf.mxu0
    %v467 = vadd.f32 0.0, %v466
    %468 = vmatmul.f32.gmra.mxu0 %v212
    %v469 = vpop.f32.mrf.mxu0
    %v470 = vadd.f32 0.0, %v469
    %471 = vmatmul.f32.gmra.mxu0 %v215
    %v472 = vpop.f32.mrf.mxu0
    %v473 = vadd.f32 0.0, %v472
    %474 = vmatmul.f32.gmra.mxu0 %v218
    %v475 = vpop.f32.mrf.mxu0
    %v476 = vadd.f32 0.0, %v475
    %477 = vmatmul.f32.gmra.mxu0 %v221
    %v478 = vpop.f32.mrf.mxu0
    %v479 = vadd.f32 0.0, %v478
    %480 = vmatmul.f32.gmra.mxu0 %v224
    %v481 = vpop.f32.mrf.mxu0
    %v482 = vadd.f32 0.0, %v481
    %483 = vmatmul.f32.gmra.mxu0 %v227
    %v484 = vpop.f32.mrf.mxu0
    %v485 = vadd.f32 0.0, %v484
    %486 = vmatmul.f32.gmra.mxu0 %v230
    %v487 = vpop.f32.mrf.mxu0
    %v488 = vadd.f32 0.0, %v487
    %489 = vmatmul.f32.gmra.mxu0 %v233
    %v490 = vpop.f32.mrf.mxu0
    %v491 = vadd.f32 0.0, %v490
    %492 = vmatmul.f32.gmra.mxu0 %v236
    %v493 = vpop.f32.mrf.mxu0
    %v494 = vadd.f32 0.0, %v493
    %495 = vdwg.mxu0
    %496 = vmatpush.msra.mxu0 %v90
    %497 = vmatpush.msra.mxu0 %v89
    %498 = vmatpush.msra.mxu0 %v88
    %499 = vmatpush.msra.mxu0 %v87
    %500 = vmatpush.msra.mxu0 %v86
    %501 = vmatpush.msra.mxu0 %v85
    %502 = vmatpush.msra.mxu0 %v84
    %503 = vmatpush.msra.mxu0 %v83
    %504 = vmatpush.msra.mxu0 %v82
    %505 = vmatpush.msra.mxu0 %v81
    %506 = vmatpush.msra.mxu0 %v80
    %507 = vmatpush.msra.mxu0 %v79
    %508 = vmatpush.msra.mxu0 %v78
    %509 = vmatpush.msra.mxu0 %v77
    %510 = vmatpush.msra.mxu0 %v76
    %511 = vmatpush.msra.mxu0 %v75
    %512 = vmatmul.f32.gmra.mxu0 %v351
    %v513 = vpop.f32.mrf.mxu0
    %v514 = vadd.f32 %v401, %v513
    %515 = vmatmul.f32.gmra.mxu0 %v352
    %v516 = vpop.f32.mrf.mxu0
    %v517 = vadd.f32 %v404, %v516
    %518 = vmatmul.f32.gmra.mxu0 %v353
    %v519 = vpop.f32.mrf.mxu0
    %v520 = vadd.f32 %v407, %v519
    %521 = vmatmul.f32.gmra.mxu0 %v354
    %v522 = vpop.f32.mrf.mxu0
    %v523 = vadd.f32 %v410, %v522
    %524 = vmatmul.f32.gmra.mxu0 %v355
    %v525 = vpop.f32.mrf.mxu0
    %v526 = vadd.f32 %v413, %v525
    %527 = vmatmul.f32.gmra.mxu0 %v356
    %v528 = vpop.f32.mrf.mxu0
    %v529 = vadd.f32 %v416, %v528
    %530 = vmatmul.f32.gmra.mxu0 %v357
    %v531 = vpop.f32.mrf.mxu0
    %v532 = vadd.f32 %v419, %v531
    %533 = vmatmul.f32.gmra.mxu0 %v358
    %v534 = vpop.f32.mrf.mxu0
    %v535 = vadd.f32 %v422, %v534
    %536 = vmatmul.f32.gmra.mxu0 %v359
    %v537 = vpop.f32.mrf.mxu0
    %v538 = vadd.f32 %v425, %v537
    %539 = vmatmul.f32.gmra.mxu0 %v360
    %v540 = vpop.f32.mrf.mxu0
    %v541 = vadd.f32 %v428, %v540
    %542 = vmatmul.f32.gmra.mxu0 %v361
    %v543 = vpop.f32.mrf.mxu0
    %v544 = vadd.f32 %v431, %v543
    %545 = vmatmul.f32.gmra.mxu0 %v362
    %v546 = vpop.f32.mrf.mxu0
    %v547 = vadd.f32 %v434, %v546
    %548 = vmatmul.f32.gmra.mxu0 %v363
    %v549 = vpop.f32.mrf.mxu0
    %v550 = vadd.f32 %v437, %v549
    %551 = vmatmul.f32.gmra.mxu0 %v364
    %v552 = vpop.f32.mrf.mxu0
    %v553 = vadd.f32 %v440, %v552
    %554 = vmatmul.f32.gmra.mxu0 %v365
    %v555 = vpop.f32.mrf.mxu0
    %v556 = vadd.f32 %v443, %v555
    %557 = vmatmul.f32.gmra.mxu0 %v366
    %v558 = vpop.f32.mrf.mxu0
    %v559 = vadd.f32 %v446, %v558
    %560 = vmatmul.f32.gmra.mxu0 %v367
    %v561 = vpop.f32.mrf.mxu0
    %v562 = vadd.f32 %v449, %v561
    %563 = vmatmul.f32.gmra.mxu0 %v368
    %v564 = vpop.f32.mrf.mxu0
    %v565 = vadd.f32 %v452, %v564
    %566 = vmatmul.f32.gmra.mxu0 %v369
    %v567 = vpop.f32.mrf.mxu0
    %v568 = vadd.f32 %v455, %v567
    %569 = vmatmul.f32.gmra.mxu0 %v370
    %v570 = vpop.f32.mrf.mxu0
    %v571 = vadd.f32 %v458, %v570
    %572 = vmatmul.f32.gmra.mxu0 %v371
    %v573 = vpop.f32.mrf.mxu0
    %v574 = vadd.f32 %v461, %v573
    %575 = vmatmul.f32.gmra.mxu0 %v372
    %v576 = vpop.f32.mrf.mxu0
    %v577 = vadd.f32 %v464, %v576
    %578 = vmatmul.f32.gmra.mxu0 %v373
    %v579 = vpop.f32.mrf.mxu0
    %v580 = vadd.f32 %v467, %v579
    %581 = vmatmul.f32.gmra.mxu0 %v374
    %v582 = vpop.f32.mrf.mxu0
    %v583 = vadd.f32 %v470, %v582
    %584 = vmatmul.f32.gmra.mxu0 %v375
    %v585 = vpop.f32.mrf.mxu0
    %v586 = vadd.f32 %v473, %v585
    %587 = vmatmul.f32.gmra.mxu0 %v376
    %v588 = vpop.f32.mrf.mxu0
    %v589 = vadd.f32 %v476, %v588
    %590 = vmatmul.f32.gmra.mxu0 %v377
    %v591 = vpop.f32.mrf.mxu0
    %v592 = vadd.f32 %v479, %v591
    %593 = vmatmul.f32.gmra.mxu0 %v378
    %v594 = vpop.f32.mrf.mxu0
    %v595 = vadd.f32 %v482, %v594
    %596 = vmatmul.f32.gmra.mxu0 %v379
    %v597 = vpop.f32.mrf.mxu0
    %v598 = vadd.f32 %v485, %v597
    %599 = vmatmul.f32.gmra.mxu0 %v380
    %v600 = vpop.f32.mrf.mxu0
    %v601 = vadd.f32 %v488, %v600
    %602 = vmatmul.f32.gmra.mxu0 %v381
    %v603 = vpop.f32.mrf.mxu0
    %v604 = vadd.f32 %v491, %v603
    %605 = vmatmul.f32.gmra.mxu0 %v382
    %v606 = vpop.f32.mrf.mxu0
    %v607 = vadd.f32 %v494, %v606
    %608 = vdwg.mxu0
    %v609 = vperm.slane %v139, 1
    %v610 = vadd.f32 %v514, %v609
    %v611 = vadd.f32 %v517, %v609
    %v612 = vadd.f32 %v520, %v609
    %v613 = vadd.f32 %v523, %v609
    %v614 = vadd.f32 %v526, %v609
    %v615 = vadd.f32 %v529, %v609
    %v616 = vadd.f32 %v532, %v609
    %v617 = vadd.f32 %v535, %v609
    %v618 = vadd.f32 %v538, %v609
    %v619 = vadd.f32 %v541, %v609
    %v620 = vadd.f32 %v544, %v609
    %v621 = vadd.f32 %v547, %v609
    %v622 = vadd.f32 %v550, %v609
    %v623 = vadd.f32 %v553, %v609
    %v624 = vadd.f32 %v556, %v609
    %v625 = vadd.f32 %v559, %v609
    %v626 = vadd.f32 %v562, %v609
    %v627 = vadd.f32 %v565, %v609
    %v628 = vadd.f32 %v568, %v609
    %v629 = vadd.f32 %v571, %v609
    %v630 = vadd.f32 %v574, %v609
    %v631 = vadd.f32 %v577, %v609
    %v632 = vadd.f32 %v580, %v609
    %v633 = vadd.f32 %v583, %v609
    %v634 = vadd.f32 %v586, %v609
    %v635 = vadd.f32 %v589, %v609
    %v636 = vadd.f32 %v592, %v609
    %v637 = vadd.f32 %v595, %v609
    %v638 = vadd.f32 %v598, %v609
    %v639 = vadd.f32 %v601, %v609
    %v640 = vadd.f32 %v604, %v609
    %v641 = vadd.f32 %v607, %v609
    %v642 = vmax.f32 %v610, 0.0
    %v643 = vmax.f32 %v611, 0.0
    %v644 = vmax.f32 %v612, 0.0
    %v645 = vmax.f32 %v613, 0.0
    %v646 = vmax.f32 %v614, 0.0
    %v647 = vmax.f32 %v615, 0.0
    %v648 = vmax.f32 %v616, 0.0
    %v649 = vmax.f32 %v617, 0.0
    %v650 = vmax.f32 %v618, 0.0
    %v651 = vmax.f32 %v619, 0.0
    %v652 = vmax.f32 %v620, 0.0
    %v653 = vmax.f32 %v621, 0.0
    %v654 = vmax.f32 %v622, 0.0
    %v655 = vmax.f32 %v623, 0.0
    %v656 = vmax.f32 %v624, 0.0
    %v657 = vmax.f32 %v625, 0.0
    %v658 = vmax.f32 %v626, 0.0
    %v659 = vmax.f32 %v627, 0.0
    %v660 = vmax.f32 %v628, 0.0
    %v661 = vmax.f32 %v629, 0.0
    %v662 = vmax.f32 %v630, 0.0
    %v663 = vmax.f32 %v631, 0.0
    %v664 = vmax.f32 %v632, 0.0
    %v665 = vmax.f32 %v633, 0.0
    %v666 = vmax.f32 %v634, 0.0
    %v667 = vmax.f32 %v635, 0.0
    %v668 = vmax.f32 %v636, 0.0
    %v669 = vmax.f32 %v637, 0.0
    %v670 = vmax.f32 %v638, 0.0
    %v671 = vmax.f32 %v639, 0.0
    %v672 = vmax.f32 %v640, 0.0
    %v673 = vmax.f32 %v641, 0.0
    %674 = vmatpush.msra.mxu0 %v106
    %675 = vmatpush.msra.mxu0 %v105
    %676 = vmatpush.msra.mxu0 %v104
    %677 = vmatpush.msra.mxu0 %v103
    %678 = vmatpush.msra.mxu0 %v102
    %679 = vmatpush.msra.mxu0 %v101
    %680 = vmatpush.msra.mxu0 %v100
    %681 = vmatpush.msra.mxu0 %v99
    %682 = vmatpush.msra.mxu0 %v98
    %683 = vmatpush.msra.mxu0 %v97
    %684 = vmatpush.msra.mxu0 %v96
    %685 = vmatpush.msra.mxu0 %v95
    %686 = vmatpush.msra.mxu0 %v94
    %687 = vmatpush.msra.mxu0 %v93
    %688 = vmatpush.msra.mxu0 %v92
    %689 = vmatpush.msra.mxu0 %v91
    %690 = vmatmul.f32.gmra.mxu0 %v642
    %v691 = vpop.f32.mrf.mxu0
    %v692 = vadd.f32 0.0, %v691
    %693 = vmatmul.f32.gmra.mxu0 %v643
    %v694 = vpop.f32.mrf.mxu0
    %v695 = vadd.f32 0.0, %v694
    %696 = vmatmul.f32.gmra.mxu0 %v644
    %v697 = vpop.f32.mrf.mxu0
    %v698 = vadd.f32 0.0, %v697
    %699 = vmatmul.f32.gmra.mxu0 %v645
    %v700 = vpop.f32.mrf.mxu0
    %v701 = vadd.f32 0.0, %v700
    %702 = vmatmul.f32.gmra.mxu0 %v646
    %v703 = vpop.f32.mrf.mxu0
    %v704 = vadd.f32 0.0, %v703
    %705 = vmatmul.f32.gmra.mxu0 %v647
    %v706 = vpop.f32.mrf.mxu0
    %v707 = vadd.f32 0.0, %v706
    %708 = vmatmul.f32.gmra.mxu0 %v648
    %v709 = vpop.f32.mrf.mxu0
    %v710 = vadd.f32 0.0, %v709
    %711 = vmatmul.f32.gmra.mxu0 %v649
    %v712 = vpop.f32.mrf.mxu0
    %v713 = vadd.f32 0.0, %v712
    %714 = vmatmul.f32.gmra.mxu0 %v650
    %v715 = vpop.f32.mrf.mxu0
    %v716 = vadd.f32 0.0, %v715
    %717 = vmatmul.f32.gmra.mxu0 %v651
    %v718 = vpop.f32.mrf.mxu0
    %v719 = vadd.f32 0.0, %v718
    %720 = vmatmul.f32.gmra.mxu0 %v652
    %v721 = vpop.f32.mrf.mxu0
    %v722 = vadd.f32 0.0, %v721
    %723 = vmatmul.f32.gmra.mxu0 %v653
    %v724 = vpop.f32.mrf.mxu0
    %v725 = vadd.f32 0.0, %v724
    %726 = vmatmul.f32.gmra.mxu0 %v654
    %v727 = vpop.f32.mrf.mxu0
    %v728 = vadd.f32 0.0, %v727
    %729 = vmatmul.f32.gmra.mxu0 %v655
    %v730 = vpop.f32.mrf.mxu0
    %v731 = vadd.f32 0.0, %v730
    %732 = vmatmul.f32.gmra.mxu0 %v656
    %v733 = vpop.f32.mrf.mxu0
    %v734 = vadd.f32 0.0, %v733
    %735 = vmatmul.f32.gmra.mxu0 %v657
    %v736 = vpop.f32.mrf.mxu0
    %v737 = vadd.f32 0.0, %v736
    %738 = vmatmul.f32.gmra.mxu0 %v658
    %v739 = vpop.f32.mrf.mxu0
    %v740 = vadd.f32 0.0, %v739
    %741 = vmatmul.f32.gmra.mxu0 %v659
    %v742 = vpop.f32.mrf.mxu0
    %v743 = vadd.f32 0.0, %v742
    %744 = vmatmul.f32.gmra.mxu0 %v660
    %v745 = vpop.f32.mrf.mxu0
    %v746 = vadd.f32 0.0, %v745
    %747 = vmatmul.f32.gmra.mxu0 %v661
    %v748 = vpop.f32.mrf.mxu0
    %v749 = vadd.f32 0.0, %v748
    %750 = vmatmul.f32.gmra.mxu0 %v662
    %v751 = vpop.f32.mrf.mxu0
    %v752 = vadd.f32 0.0, %v751
    %753 = vmatmul.f32.gmra.mxu0 %v663
    %v754 = vpop.f32.mrf.mxu0
    %v755 = vadd.f32 0.0, %v754
    %756 = vmatmul.f32.gmra.mxu0 %v664
    %v757 = vpop.f32.mrf.mxu0
    %v758 = vadd.f32 0.0, %v757
    %759 = vmatmul.f32.gmra.mxu0 %v665
    %v760 = vpop.f32.mrf.mxu0
    %v761 = vadd.f32 0.0, %v760
    %762 = vmatmul.f32.gmra.mxu0 %v666
    %v763 = vpop.f32.mrf.mxu0
    %v764 = vadd.f32 0.0, %v763
    %765 = vmatmul.f32.gmra.mxu0 %v667
    %v766 = vpop.f32.mrf.mxu0
    %v767 = vadd.f32 0.0, %v766
    %768 = vmatmul.f32.gmra.mxu0 %v668
    %v769 = vpop.f32.mrf.mxu0
    %v770 = vadd.f32 0.0, %v769
    %771 = vmatmul.f32.gmra.mxu0 %v669
    %v772 = vpop.f32.mrf.mxu0
    %v773 = vadd.f32 0.0, %v772
    %774 = vmatmul.f32.gmra.mxu0 %v670
    %v775 = vpop.f32.mrf.mxu0
    %v776 = vadd.f32 0.0, %v775
    %777 = vmatmul.f32.gmra.mxu0 %v671
    %v778 = vpop.f32.mrf.mxu0
    %v779 = vadd.f32 0.0, %v778
    %780 = vmatmul.f32.gmra.mxu0 %v672
    %v781 = vpop.f32.mrf.mxu0
    %v782 = vadd.f32 0.0, %v781
    %783 = vmatmul.f32.gmra.mxu0 %v673
    %v784 = vpop.f32.mrf.mxu0
    %v785 = vadd.f32 0.0, %v784
    %786 = vdwg.mxu0
    %787 = vmatpush.msra.mxu0 0.0
    %788 = vmatpush.msra.mxu0 0.0
    %789 = vmatpush.msra.mxu0 0.0
    %790 = vmatpush.msra.mxu0 0.0
    %791 = vmatpush.msra.mxu0 0.0
    %792 = vmatpush.msra.mxu0 0.0
    %793 = vmatpush.msra.mxu0 0.0
    %794 = vmatpush.msra.mxu0 0.0
    %795 = vmatpush.msra.mxu0 0.0
    %796 = vmatpush.msra.mxu0 0.0
    %797 = vmatpush.msra.mxu0 0.0
    %798 = vmatpush.msra.mxu0 %v74
    %799 = vmatpush.msra.mxu0 %v73
    %800 = vmatpush.msra.mxu0 %v72
    %801 = vmatpush.msra.mxu0 %v71
    %802 = vmatpush.msra.mxu0 %v70
    %803 = vmatmul.f32.gmra.mxu0 %v143
    %v804 = vpop.f32.mrf.mxu0
    %v805 = vadd.f32 %v692, %v804
    %806 = vmatmul.f32.gmra.mxu0 %v146
    %v807 = vpop.f32.mrf.mxu0
    %v808 = vadd.f32 %v695, %v807
    %809 = vmatmul.f32.gmra.mxu0 %v149
    %v810 = vpop.f32.mrf.mxu0
    %v811 = vadd.f32 %v698, %v810
    %812 = vmatmul.f32.gmra.mxu0 %v152
    %v813 = vpop.f32.mrf.mxu0
    %v814 = vadd.f32 %v701, %v813
    %815 = vmatmul.f32.gmra.mxu0 %v155
    %v816 = vpop.f32.mrf.mxu0
    %v817 = vadd.f32 %v704, %v816
    %818 = vmatmul.f32.gmra.mxu0 %v158
    %v819 = vpop.f32.mrf.mxu0
    %v820 = vadd.f32 %v707, %v819
    %821 = vmatmul.f32.gmra.mxu0 %v161
    %v822 = vpop.f32.mrf.mxu0
    %v823 = vadd.f32 %v710, %v822
    %824 = vmatmul.f32.gmra.mxu0 %v164
    %v825 = vpop.f32.mrf.mxu0
    %v826 = vadd.f32 %v713, %v825
    %827 = vmatmul.f32.gmra.mxu0 %v167
    %v828 = vpop.f32.mrf.mxu0
    %v829 = vadd.f32 %v716, %v828
    %830 = vmatmul.f32.gmra.mxu0 %v170
    %v831 = vpop.f32.mrf.mxu0
    %v832 = vadd.f32 %v719, %v831
    %833 = vmatmul.f32.gmra.mxu0 %v173
    %v834 = vpop.f32.mrf.mxu0
    %v835 = vadd.f32 %v722, %v834
    %836 = vmatmul.f32.gmra.mxu0 %v176
    %v837 = vpop.f32.mrf.mxu0
    %v838 = vadd.f32 %v725, %v837
    %839 = vmatmul.f32.gmra.mxu0 %v179
    %v840 = vpop.f32.mrf.mxu0
    %v841 = vadd.f32 %v728, %v840
    %842 = vmatmul.f32.gmra.mxu0 %v182
    %v843 = vpop.f32.mrf.mxu0
    %v844 = vadd.f32 %v731, %v843
    %845 = vmatmul.f32.gmra.mxu0 %v185
    %v846 = vpop.f32.mrf.mxu0
    %v847 = vadd.f32 %v734, %v846
    %848 = vmatmul.f32.gmra.mxu0 %v188
    %v849 = vpop.f32.mrf.mxu0
    %v850 = vadd.f32 %v737, %v849
    %851 = vmatmul.f32.gmra.mxu0 %v191
    %v852 = vpop.f32.mrf.mxu0
    %v853 = vadd.f32 %v740, %v852
    %854 = vmatmul.f32.gmra.mxu0 %v194
    %v855 = vpop.f32.mrf.mxu0
    %v856 = vadd.f32 %v743, %v855
    %857 = vmatmul.f32.gmra.mxu0 %v197
    %v858 = vpop.f32.mrf.mxu0
    %v859 = vadd.f32 %v746, %v858
    %860 = vmatmul.f32.gmra.mxu0 %v200
    %v861 = vpop.f32.mrf.mxu0
    %v862 = vadd.f32 %v749, %v861
    %863 = vmatmul.f32.gmra.mxu0 %v203
    %v864 = vpop.f32.mrf.mxu0
    %v865 = vadd.f32 %v752, %v864
    %866 = vmatmul.f32.gmra.mxu0 %v206
    %v867 = vpop.f32.mrf.mxu0
    %v868 = vadd.f32 %v755, %v867
    %869 = vmatmul.f32.gmra.mxu0 %v209
    %v870 = vpop.f32.mrf.mxu0
    %v871 = vadd.f32 %v758, %v870
    %872 = vmatmul.f32.gmra.mxu0 %v212
    %v873 = vpop.f32.mrf.mxu0
    %v874 = vadd.f32 %v761, %v873
    %875 = vmatmul.f32.gmra.mxu0 %v215
    %v876 = vpop.f32.mrf.mxu0
    %v877 = vadd.f32 %v764, %v876
    %878 = vmatmul.f32.gmra.mxu0 %v218
    %v879 = vpop.f32.mrf.mxu0
    %v880 = vadd.f32 %v767, %v879
    %881 = vmatmul.f32.gmra.mxu0 %v221
    %v882 = vpop.f32.mrf.mxu0
    %v883 = vadd.f32 %v770, %v882
    %884 = vmatmul.f32.gmra.mxu0 %v224
    %v885 = vpop.f32.mrf.mxu0
    %v886 = vadd.f32 %v773, %v885
    %887 = vmatmul.f32.gmra.mxu0 %v227
    %v888 = vpop.f32.mrf.mxu0
    %v889 = vadd.f32 %v776, %v888
    %890 = vmatmul.f32.gmra.mxu0 %v230
    %v891 = vpop.f32.mrf.mxu0
    %v892 = vadd.f32 %v779, %v891
    %893 = vmatmul.f32.gmra.mxu0 %v233
    %v894 = vpop.f32.mrf.mxu0
    %v895 = vadd.f32 %v782, %v894
    %896 = vmatmul.f32.gmra.mxu0 %v236
    %v897 = vpop.f32.mrf.mxu0
    %v898 = vadd.f32 %v785, %v897
    %899 = vdwg.mxu0
    %v900 = vperm.slane %v139, 2
    %v901 = vadd.f32 %v805, %v900
    %v902 = vadd.f32 %v808, %v900
    %v903 = vadd.f32 %v811, %v900
    %v904 = vadd.f32 %v814, %v900
    %v905 = vadd.f32 %v817, %v900
    %v906 = vadd.f32 %v820, %v900
    %v907 = vadd.f32 %v823, %v900
    %v908 = vadd.f32 %v826, %v900
    %v909 = vadd.f32 %v829, %v900
    %v910 = vadd.f32 %v832, %v900
    %v911 = vadd.f32 %v835, %v900
    %v912 = vadd.f32 %v838, %v900
    %v913 = vadd.f32 %v841, %v900
    %v914 = vadd.f32 %v844, %v900
    %v915 = vadd.f32 %v847, %v900
    %v916 = vadd.f32 %v850, %v900
    %v917 = vadd.f32 %v853, %v900
    %v918 = vadd.f32 %v856, %v900
    %v919 = vadd.f32 %v859, %v900
    %v920 = vadd.f32 %v862, %v900
    %v921 = vadd.f32 %v865, %v900
    %v922 = vadd.f32 %v868, %v900
    %v923 = vadd.f32 %v871, %v900
    %v924 = vadd.f32 %v874, %v900
    %v925 = vadd.f32 %v877, %v900
    %v926 = vadd.f32 %v880, %v900
    %v927 = vadd.f32 %v883, %v900
    %v928 = vadd.f32 %v886, %v900
    %v929 = vadd.f32 %v889, %v900
    %v930 = vadd.f32 %v892, %v900
    %v931 = vadd.f32 %v895, %v900
    %v932 = vadd.f32 %v898, %v900
    %v933 = vmax.f32 %v901, 0.0
    %v934 = vmax.f32 %v902, 0.0
    %v935 = vmax.f32 %v903, 0.0
    %v936 = vmax.f32 %v904, 0.0
    %v937 = vmax.f32 %v905, 0.0
    %v938 = vmax.f32 %v906, 0.0
    %v939 = vmax.f32 %v907, 0.0
    %v940 = vmax.f32 %v908, 0.0
    %v941 = vmax.f32 %v909, 0.0
    %v942 = vmax.f32 %v910, 0.0
    %v943 = vmax.f32 %v911, 0.0
    %v944 = vmax.f32 %v912, 0.0
    %v945 = vmax.f32 %v913, 0.0
    %v946 = vmax.f32 %v914, 0.0
    %v947 = vmax.f32 %v915, 0.0
    %v948 = vmax.f32 %v916, 0.0
    %v949 = vmax.f32 %v917, 0.0
    %v950 = vmax.f32 %v918, 0.0
    %v951 = vmax.f32 %v919, 0.0
    %v952 = vmax.f32 %v920, 0.0
    %v953 = vmax.f32 %v921, 0.0
    %v954 = vmax.f32 %v922, 0.0
    %v955 = vmax.f32 %v923, 0.0
    %v956 = vmax.f32 %v924, 0.0
    %v957 = vmax.f32 %v925, 0.0
    %v958 = vmax.f32 %v926, 0.0
    %v959 = vmax.f32 %v927, 0.0
    %v960 = vmax.f32 %v928, 0.0
    %v961 = vmax.f32 %v929, 0.0
    %v962 = vmax.f32 %v930, 0.0
    %v963 = vmax.f32 %v931, 0.0
    %v964 = vmax.f32 %v932, 0.0
    %v965 = vperm.slane %v139, 3
    %966 = vmatpush.msra.mxu0 %v122
    %967 = vmatpush.msra.mxu0 %v121
    %968 = vmatpush.msra.mxu0 %v120
    %969 = vmatpush.msra.mxu0 %v119
    %970 = vmatpush.msra.mxu0 %v118
    %971 = vmatpush.msra.mxu0 %v117
    %972 = vmatpush.msra.mxu0 %v116
    %973 = vmatpush.msra.mxu0 %v115
    %974 = vmatpush.msra.mxu0 %v114
    %975 = vmatpush.msra.mxu0 %v113
    %976 = vmatpush.msra.mxu0 %v112
    %977 = vmatpush.msra.mxu0 %v111
    %978 = vmatpush.msra.mxu0 %v110
    %979 = vmatpush.msra.mxu0 %v109
    %980 = vmatpush.msra.mxu0 %v108
    %981 = vmatpush.msra.mxu0 %v107
    %982 = vmatmul.f32.gmra.mxu0 %v933
    %v983 = vpop.f32.mrf.mxu0
    %v984 = vadd.f32 %v965, %v983
    %985 = vmatmul.f32.gmra.mxu0 %v934
    %v986 = vpop.f32.mrf.mxu0
    %v987 = vadd.f32 %v965, %v986
    %988 = vmatmul.f32.gmra.mxu0 %v935
    %v989 = vpop.f32.mrf.mxu0
    %v990 = vadd.f32 %v965, %v989
    %991 = vmatmul.f32.gmra.mxu0 %v936
    %v992 = vpop.f32.mrf.mxu0
    %v993 = vadd.f32 %v965, %v992
    %994 = vmatmul.f32.gmra.mxu0 %v937
    %v995 = vpop.f32.mrf.mxu0
    %v996 = vadd.f32 %v965, %v995
    %997 = vmatmul.f32.gmra.mxu0 %v938
    %v998 = vpop.f32.mrf.mxu0
    %v999 = vadd.f32 %v965, %v998
    %1000 = vmatmul.f32.gmra.mxu0 %v939
    %v1001 = vpop.f32.mrf.mxu0
    %v1002 = vadd.f32 %v965, %v1001
    %1003 = vmatmul.f32.gmra.mxu0 %v940
    %v1004 = vpop.f32.mrf.mxu0
    %v1005 = vadd.f32 %v965, %v1004
    %1006 = vmatmul.f32.gmra.mxu0 %v941
    %v1007 = vpop.f32.mrf.mxu0
    %v1008 = vadd.f32 %v965, %v1007
    %1009 = vmatmul.f32.gmra.mxu0 %v942
    %v1010 = vpop.f32.mrf.mxu0
    %v1011 = vadd.f32 %v965, %v1010
    %1012 = vmatmul.f32.gmra.mxu0 %v943
    %v1013 = vpop.f32.mrf.mxu0
    %v1014 = vadd.f32 %v965, %v1013
    %1015 = vmatmul.f32.gmra.mxu0 %v944
    %v1016 = vpop.f32.mrf.mxu0
    %v1017 = vadd.f32 %v965, %v1016
    %1018 = vmatmul.f32.gmra.mxu0 %v945
    %v1019 = vpop.f32.mrf.mxu0
    %v1020 = vadd.f32 %v965, %v1019
    %1021 = vmatmul.f32.gmra.mxu0 %v946
    %v1022 = vpop.f32.mrf.mxu0
    %v1023 = vadd.f32 %v965, %v1022
    %1024 = vmatmul.f32.gmra.mxu0 %v947
    %v1025 = vpop.f32.mrf.mxu0
    %v1026 = vadd.f32 %v965, %v1025
    %1027 = vmatmul.f32.gmra.mxu0 %v948
    %v1028 = vpop.f32.mrf.mxu0
    %v1029 = vadd.f32 %v965, %v1028
    %1030 = vmatmul.f32.gmra.mxu0 %v949
    %v1031 = vpop.f32.mrf.mxu0
    %v1032 = vadd.f32 %v965, %v1031
    %1033 = vmatmul.f32.gmra.mxu0 %v950
    %v1034 = vpop.f32.mrf.mxu0
    %v1035 = vadd.f32 %v965, %v1034
    %1036 = vmatmul.f32.gmra.mxu0 %v951
    %v1037 = vpop.f32.mrf.mxu0
    %v1038 = vadd.f32 %v965, %v1037
    %1039 = vmatmul.f32.gmra.mxu0 %v952
    %v1040 = vpop.f32.mrf.mxu0
    %v1041 = vadd.f32 %v965, %v1040
    %1042 = vmatmul.f32.gmra.mxu0 %v953
    %v1043 = vpop.f32.mrf.mxu0
    %v1044 = vadd.f32 %v965, %v1043
    %1045 = vmatmul.f32.gmra.mxu0 %v954
    %v1046 = vpop.f32.mrf.mxu0
    %v1047 = vadd.f32 %v965, %v1046
    %1048 = vmatmul.f32.gmra.mxu0 %v955
    %v1049 = vpop.f32.mrf.mxu0
    %v1050 = vadd.f32 %v965, %v1049
    %1051 = vmatmul.f32.gmra.mxu0 %v956
    %v1052 = vpop.f32.mrf.mxu0
    %v1053 = vadd.f32 %v965, %v1052
    %1054 = vmatmul.f32.gmra.mxu0 %v957
    %v1055 = vpop.f32.mrf.mxu0
    %v1056 = vadd.f32 %v965, %v1055
    %1057 = vmatmul.f32.gmra.mxu0 %v958
    %v1058 = vpop.f32.mrf.mxu0
    %v1059 = vadd.f32 %v965, %v1058
    %1060 = vmatmul.f32.gmra.mxu0 %v959
    %v1061 = vpop.f32.mrf.mxu0
    %v1062 = vadd.f32 %v965, %v1061
    %1063 = vmatmul.f32.gmra.mxu0 %v960
    %v1064 = vpop.f32.mrf.mxu0
    %v1065 = vadd.f32 %v965, %v1064
    %1066 = vmatmul.f32.gmra.mxu0 %v961
    %v1067 = vpop.f32.mrf.mxu0
    %v1068 = vadd.f32 %v965, %v1067
    %1069 = vmatmul.f32.gmra.mxu0 %v962
    %v1070 = vpop.f32.mrf.mxu0
    %v1071 = vadd.f32 %v965, %v1070
    %1072 = vmatmul.f32.gmra.mxu0 %v963
    %v1073 = vpop.f32.mrf.mxu0
    %v1074 = vadd.f32 %v965, %v1073
    %1075 = vmatmul.f32.gmra.mxu0 %v964
    %v1076 = vpop.f32.mrf.mxu0
    %v1077 = vadd.f32 %v965, %v1076
    %1078 = vdwg.mxu0
    %v1079 = vmax.f32 %v984, 0.0
    %v1080 = vmax.f32 %v987, 0.0
    %v1081 = vmax.f32 %v990, 0.0
    %v1082 = vmax.f32 %v993, 0.0
    %v1083 = vmax.f32 %v996, 0.0
    %v1084 = vmax.f32 %v999, 0.0
    %v1085 = vmax.f32 %v1002, 0.0
    %v1086 = vmax.f32 %v1005, 0.0
    %v1087 = vmax.f32 %v1008, 0.0
    %v1088 = vmax.f32 %v1011, 0.0
    %v1089 = vmax.f32 %v1014, 0.0
    %v1090 = vmax.f32 %v1017, 0.0
    %v1091 = vmax.f32 %v1020, 0.0
    %v1092 = vmax.f32 %v1023, 0.0
    %v1093 = vmax.f32 %v1026, 0.0
    %v1094 = vmax.f32 %v1029, 0.0
    %v1095 = vmax.f32 %v1032, 0.0
    %v1096 = vmax.f32 %v1035, 0.0
    %v1097 = vmax.f32 %v1038, 0.0
    %v1098 = vmax.f32 %v1041, 0.0
    %v1099 = vmax.f32 %v1044, 0.0
    %v1100 = vmax.f32 %v1047, 0.0
    %v1101 = vmax.f32 %v1050, 0.0
    %v1102 = vmax.f32 %v1053, 0.0
    %v1103 = vmax.f32 %v1056, 0.0
    %v1104 = vmax.f32 %v1059, 0.0
    %v1105 = vmax.f32 %v1062, 0.0
    %v1106 = vmax.f32 %v1065, 0.0
    %v1107 = vmax.f32 %v1068, 0.0
    %v1108 = vmax.f32 %v1071, 0.0
    %v1109 = vmax.f32 %v1074, 0.0
    %v1110 = vmax.f32 %v1077, 0.0
    %v1111 = vperm.slane %v139, 4
    %1112 = vmatpush.msra.mxu0 %v138
    %1113 = vmatpush.msra.mxu0 %v137
    %1114 = vmatpush.msra.mxu0 %v136
    %1115 = vmatpush.msra.mxu0 %v135
    %1116 = vmatpush.msra.mxu0 %v134
    %1117 = vmatpush.msra.mxu0 %v133
    %1118 = vmatpush.msra.mxu0 %v132
    %1119 = vmatpush.msra.mxu0 %v131
    %1120 = vmatpush.msra.mxu0 %v130
    %1121 = vmatpush.msra.mxu0 %v129
    %1122 = vmatpush.msra.mxu0 %v128
    %1123 = vmatpush.msra.mxu0 %v127
    %1124 = vmatpush.msra.mxu0 %v126
    %1125 = vmatpush.msra.mxu0 %v125
    %1126 = vmatpush.msra.mxu0 %v124
    %1127 = vmatpush.msra.mxu0 %v123
    %1128 = vmatmul.f32.gmra.mxu0 %v1079
    %v1129 = vpop.f32.mrf.mxu0
    %v1130 = vadd.f32 %v1111, %v1129
    %1131 = vmatmul.f32.gmra.mxu0 %v1080
    %v1132 = vpop.f32.mrf.mxu0
    %v1133 = vadd.f32 %v1111, %v1132
    %1134 = vmatmul.f32.gmra.mxu0 %v1081
    %v1135 = vpop.f32.mrf.mxu0
    %v1136 = vadd.f32 %v1111, %v1135
    %1137 = vmatmul.f32.gmra.mxu0 %v1082
    %v1138 = vpop.f32.mrf.mxu0
    %v1139 = vadd.f32 %v1111, %v1138
    %1140 = vmatmul.f32.gmra.mxu0 %v1083
    %v1141 = vpop.f32.mrf.mxu0
    %v1142 = vadd.f32 %v1111, %v1141
    %1143 = vmatmul.f32.gmra.mxu0 %v1084
    %v1144 = vpop.f32.mrf.mxu0
    %v1145 = vadd.f32 %v1111, %v1144
    %1146 = vmatmul.f32.gmra.mxu0 %v1085
    %v1147 = vpop.f32.mrf.mxu0
    %v1148 = vadd.f32 %v1111, %v1147
    %1149 = vmatmul.f32.gmra.mxu0 %v1086
    %v1150 = vpop.f32.mrf.mxu0
    %v1151 = vadd.f32 %v1111, %v1150
    %1152 = vmatmul.f32.gmra.mxu0 %v1087
    %v1153 = vpop.f32.mrf.mxu0
    %v1154 = vadd.f32 %v1111, %v1153
    %1155 = vmatmul.f32.gmra.mxu0 %v1088
    %v1156 = vpop.f32.mrf.mxu0
    %v1157 = vadd.f32 %v1111, %v1156
    %1158 = vmatmul.f32.gmra.mxu0 %v1089
    %v1159 = vpop.f32.mrf.mxu0
    %v1160 = vadd.f32 %v1111, %v1159
    %1161 = vmatmul.f32.gmra.mxu0 %v1090
    %v1162 = vpop.f32.mrf.mxu0
    %v1163 = vadd.f32 %v1111, %v1162
    %1164 = vmatmul.f32.gmra.mxu0 %v1091
    %v1165 = vpop.f32.mrf.mxu0
    %v1166 = vadd.f32 %v1111, %v1165
    %1167 = vmatmul.f32.gmra.mxu0 %v1092
    %v1168 = vpop.f32.mrf.mxu0
    %v1169 = vadd.f32 %v1111, %v1168
    %1170 = vmatmul.f32.gmra.mxu0 %v1093
    %v1171 = vpop.f32.mrf.mxu0
    %v1172 = vadd.f32 %v1111, %v1171
    %1173 = vmatmul.f32.gmra.mxu0 %v1094
    %v1174 = vpop.f32.mrf.mxu0
    %v1175 = vadd.f32 %v1111, %v1174
    %1176 = vmatmul.f32.gmra.mxu0 %v1095
    %v1177 = vpop.f32.mrf.mxu0
    %v1178 = vadd.f32 %v1111, %v1177
    %1179 = vmatmul.f32.gmra.mxu0 %v1096
    %v1180 = vpop.f32.mrf.mxu0
    %v1181 = vadd.f32 %v1111, %v1180
    %1182 = vmatmul.f32.gmra.mxu0 %v1097
    %v1183 = vpop.f32.mrf.mxu0
    %v1184 = vadd.f32 %v1111, %v1183
    %1185 = vmatmul.f32.gmra.mxu0 %v1098
    %v1186 = vpop.f32.mrf.mxu0
    %v1187 = vadd.f32 %v1111, %v1186
    %1188 = vmatmul.f32.gmra.mxu0 %v1099
    %v1189 = vpop.f32.mrf.mxu0
    %v1190 = vadd.f32 %v1111, %v1189
    %1191 = vmatmul.f32.gmra.mxu0 %v1100
    %v1192 = vpop.f32.mrf.mxu0
    %v1193 = vadd.f32 %v1111, %v1192
    %1194 = vmatmul.f32.gmra.mxu0 %v1101
    %v1195 = vpop.f32.mrf.mxu0
    %v1196 = vadd.f32 %v1111, %v1195
    %1197 = vmatmul.f32.gmra.mxu0 %v1102
    %v1198 = vpop.f32.mrf.mxu0
    %v1199 = vadd.f32 %v1111, %v1198
    %1200 = vmatmul.f32.gmra.mxu0 %v1103
    %v1201 = vpop.f32.mrf.mxu0
    %v1202 = vadd.f32 %v1111, %v1201
    %1203 = vmatmul.f32.gmra.mxu0 %v1104
    %v1204 = vpop.f32.mrf.mxu0
    %v1205 = vadd.f32 %v1111, %v1204
    %1206 = vmatmul.f32.gmra.mxu0 %v1105
    %v1207 = vpop.f32.mrf.mxu0
    %v1208 = vadd.f32 %v1111, %v1207
    %1209 = vmatmul.f32.gmra.mxu0 %v1106
    %v1210 = vpop.f32.mrf.mxu0
    %v1211 = vadd.f32 %v1111, %v1210
    %1212 = vmatmul.f32.gmra.mxu0 %v1107
    %v1213 = vpop.f32.mrf.mxu0
    %v1214 = vadd.f32 %v1111, %v1213
    %1215 = vmatmul.f32.gmra.mxu0 %v1108
    %v1216 = vpop.f32.mrf.mxu0
    %v1217 = vadd.f32 %v1111, %v1216
    %1218 = vmatmul.f32.gmra.mxu0 %v1109
    %v1219 = vpop.f32.mrf.mxu0
    %v1220 = vadd.f32 %v1111, %v1219
    %1221 = vmatmul.f32.gmra.mxu0 %v1110
    %v1222 = vpop.f32.mrf.mxu0
    %v1223 = vadd.f32 %v1111, %v1222
    %1224 = vdwg.mxu0
    %1225 = vst [vmem:[#allocation5] sm:$0xff] %v1130
    %1226 = vst [vmem:[#allocation5 + $0x8] sm:$0xff] %v1133
    %1227 = vst [vmem:[#allocation5 + $0x10] sm:$0xff] %v1136
    %1228 = vst [vmem:[#allocation5 + $0x18] sm:$0xff] %v1139
    %1229 = vst [vmem:[#allocation5 + $0x20] sm:$0xff] %v1142
    %1230 = vst [vmem:[#allocation5 + $0x28] sm:$0xff] %v1145
    %1231 = vst [vmem:[#allocation5 + $0x30] sm:$0xff] %v1148
    %1232 = vst [vmem:[#allocation5 + $0x38] sm:$0xff] %v1151
    %1233 = vst [vmem:[#allocation5 + $0x40] sm:$0xff] %v1154
    %1234 = vst [vmem:[#allocation5 + $0x48] sm:$0xff] %v1157
    %1235 = vst [vmem:[#allocation5 + $0x50] sm:$0xff] %v1160
    %1236 = vst [vmem:[#allocation5 + $0x58] sm:$0xff] %v1163
    %1237 = vst [vmem:[#allocation5 + $0x60] sm:$0xff] %v1166
    %1238 = vst [vmem:[#allocation5 + $0x68] sm:$0xff] %v1169
    %1239 = vst [vmem:[#allocation5 + $0x70] sm:$0xff] %v1172
    %1240 = vst [vmem:[#allocation5 + $0x78] sm:$0xff] %v1175
    %1241 = vst [vmem:[#allocation5 + $0x80] sm:$0xff] %v1178
    %1242 = vst [vmem:[#allocation5 + $0x88] sm:$0xff] %v1181
    %1243 = vst [vmem:[#allocation5 + $0x90] sm:$0xff] %v1184
    %1244 = vst [vmem:[#allocation5 + $0x98] sm:$0xff] %v1187
    %1245 = vst [vmem:[#allocation5 + $0xa0] sm:$0xff] %v1190
    %1246 = vst [vmem:[#allocation5 + $0xa8] sm:$0xff] %v1193
    %1247 = vst [vmem:[#allocation5 + $0xb0] sm:$0xff] %v1196
    %1248 = vst [vmem:[#allocation5 + $0xb8] sm:$0xff] %v1199
    %1249 = vst [vmem:[#allocation5 + $0xc0] sm:$0xff] %v1202
    %1250 = vst [vmem:[#allocation5 + $0xc8] sm:$0xff] %v1205
    %1251 = vst [vmem:[#allocation5 + $0xd0] sm:$0xff] %v1208
    %1252 = vst [vmem:[#allocation5 + $0xd8] sm:$0xff] %v1211
    %1253 = vst [vmem:[#allocation5 + $0xe0] sm:$0xff] %v1214
    %1254 = vst [vmem:[#allocation5 + $0xe8] sm:$0xff] %v1217
    %1255 = vst [vmem:[#allocation5 + $0xf0] sm:$0xff] %v1220
    %1256 = vst [vmem:[#allocation5 + $0xf8] sm:$0xff] %v1223
    // Predicated region
    $region14: #{tpu_custom_call.1} parent=1 // pred_check
      _
    $region15: #{tpu_custom_call.1} parent=1 // pred_check_branch
      %1258 = sbr.rel (0) target = $region17
    $region16: #{tpu_custom_call.1} parent=1 // pred_region
      %1260 = vsyncadd [#allocation4], 0
      %s1261 = sshll.u32 [#allocation5], 4
      %s1262 = int_to_ptr.vmem [resolvable:$true] %s1261
      %s1263 = sshll.u32 %s2, 4
      %s1264 = int_to_ptr.hbm [resolvable:$true] %s1263
      %1269 = dma.vmem_to_hbm [thread:$0]  %s1262, 4096, %s1264, [#allocation4], 128, 128, 8
    $region17: #{tpu_custom_call.1} parent=1 // pred_fallthru
      _
    // Predicated region
    $region18: #{tpu_custom_call.1} parent=1 // pred_check
      _
    $region19: #{tpu_custom_call.1} parent=1 // pred_check_branch
      %1271 = sbr.rel (0) target = $region21
    $region20: #{tpu_custom_call.1} parent=1 // pred_region
      %1273 = dma.done [#allocation4], 4096
    $region21: #{tpu_custom_call.1} parent=1 // pred_fallthru
      _
    %1274 = vsyncpa [#allocation3], 1
    %1275 = vsyncpa [#allocation4], 1

</llo_original>
